<compile_context>
chip_gen: v6e
topology: v6e:2x2x1
jax: 0.10.0
libtpu: 0.0.40
codegen_flags: <defaults>
</compile_context>

<pallas_src>
import functools

import jax
import jax.numpy as jnp
import numpy as np
from jax.experimental import pallas as pl
from jax.experimental.pallas import tpu as pltpu


def _round_up(x, m):
    return (x + m - 1) // m * m


# ----------------------------- Pallas kernel ------------------------------ #

def _pair_encoder_kernel(patch_ref, wc_ref, bc_ref, pool_ref, wl_ref, bl_ref,
                         out_ref, *, inv_p):
    # patch_ref: (RB*P, CKKp) bf16  im2col patches for RB (batch, view) rows.
    # wc_ref:    (CKKp, Fp)   bf16  conv weight (flattened, transposed).
    # bc_ref:    (1, Fp)      f32   conv bias.
    # pool_ref:  (RB, RB*P)   bf16  block-local block-diagonal ones (MXU pool).
    # wl_ref:    (Fp, E)      bf16  linear weight.
    # bl_ref:    (1, E)       f32   linear bias.
    # out_ref:   (RB, E)      f32   one embedding row per (batch, view).
    conv = jnp.dot(patch_ref[...], wc_ref[...],
                   preferred_element_type=jnp.float32)            # (RB*P, Fp)
    act = jnp.maximum(conv + bc_ref[...], 0.0).astype(jnp.bfloat16)   # ReLU
    pooled = jnp.dot(pool_ref[...], act,
                     preferred_element_type=jnp.float32)          # (RB, Fp) sums
    pooled = pooled * inv_p                                       # f32 mean
    emb = jnp.dot(pooled.astype(jnp.bfloat16), wl_ref[...],
                  preferred_element_type=jnp.float32)             # (RB, E)
    out_ref[...] = emb + bl_ref[...]


# ------------------------------ JAX glue ----------------------------------- #

def _im2col(xv, K):
    """xv: [N, C, H, W] -> patches [N, OH*OW, C*K*K] (feature order C, KH, KW)."""
    N, C, H, W = xv.shape
    OH, OW = H - K + 1, W - K + 1
    cols = []
    for kh in range(K):
        for kw in range(K):
            cols.append(xv[:, :, kh:kh + OH, kw:kw + OW])          # [N, C, OH, OW]
    p = jnp.stack(cols, axis=0).reshape(K, K, N, C, OH, OW)
    p = p.transpose(2, 4, 5, 3, 0, 1)                              # [N, OH, OW, C, K, K]
    return p.reshape(N, OH * OW, C * K * K)


def make_view_pair_encoder(params, *, in_shape):
    """params: (wc, bc, wl, bl) with torch shapes [F,C,K,K],[F],[E,F],[E].
    in_shape: (C, H, W) of one view.  Returns a jitted forward:
    x [B, 2, C, H, W] f32 -> [B, 2*E] f32."""
    wc, bc, wl, bl = (np.asarray(p, np.float32) for p in params)
    C, H, W = in_shape
    F, _, K, _ = wc.shape
    E = wl.shape[0]
    OH, OW = H - K + 1, W - K + 1
    P, CKK = OH * OW, C * K * K
    CKKp = _round_up(CKK, 128)
    Fp = _round_up(F, 128)

    # ---- parameter-derived operands: built ONCE here (hoisted out of fwd) --
    wc_np = np.zeros((CKKp, Fp), np.float32)
    wc_np[:CKK, :F] = wc.reshape(F, CKK).T
    wc_mat = jnp.asarray(wc_np, jnp.bfloat16)

    bc_np = np.zeros((1, Fp), np.float32)
    bc_np[0, :F] = bc
    bc_row = jnp.asarray(bc_np)

    wl_np = np.zeros((Fp, E), np.float32)
    wl_np[:F, :] = wl.T
    wl_mat = jnp.asarray(wl_np, jnp.bfloat16)

    bl_row = jnp.asarray(bl.reshape(1, E))

    def _make_pool(rb):
        # Block-local block-diagonal ones: segmented spatial sum on the MXU.
        # Exact in bf16; size is O(RB*RB*P), independent of batch size.
        pool = np.zeros((rb, rb * P), np.float32)
        for r in range(rb):
            pool[r, r * P:(r + 1) * P] = 1.0
        return jnp.asarray(pool, jnp.bfloat16)

    kernel = functools.partial(_pair_encoder_kernel, inv_p=1.0 / P)

    @jax.jit
    def forward(x):
        B, V, xc, xh, xw = x.shape
        assert V == 2 and (xc, xh, xw) == (C, H, W)
        N = B * V

        # Rows ordered batch-major, view-minor (row n = b*V + v): the final
        # torch.cat([y0, y1], dim=1) is then a free contiguous reshape.
        xv = x.reshape(N, C, H, W).astype(jnp.bfloat16)
        patches = _im2col(xv, K).reshape(N * P, CKK)               # bf16
        patches = jnp.pad(patches, ((0, 0), (0, CKKp - CKK)))      # lanes -> 128

        # Row-block size.  Grid axis is "parallel" (megacore on v7x) and keeps
        # the pool matrix and per-step VMEM O(RB), independent of batch size.
        if N <= 8:
            RB, NB = N, 1
        else:
            RB = 8
            NB = pl.cdiv(N, RB)
            pad_rows = NB * RB - N
            if pad_rows:
                patches = jnp.pad(patches, ((0, pad_rows * P), (0, 0)))
        pool_mat = _make_pool(RB)            # trace-time constant, no runtime cost
        NPB = RB * P                         # patch rows per grid step
        N_out = NB * RB

        flops = (2 * N_out * P * CKKp * Fp       # conv matmul
                 + 2 * N_out * RB * P * Fp       # block-local MXU pool
                 + 2 * N_out * Fp * E)           # final linear
        bytes_accessed = (patches.size * 2 + wc_mat.size * 2 + bc_row.size * 4
                          + pool_mat.size * 2 + wl_mat.size * 2 + bl_row.size * 4
                          + N_out * E * 4)

        emb = pl.pallas_call(
            kernel,
            out_shape=jax.ShapeDtypeStruct((N_out, E), jnp.float32),
            grid=(NB,),
            in_specs=[
                pl.BlockSpec((NPB, CKKp), lambda i: (i, 0)),   # patches: per block
                pl.BlockSpec((CKKp, Fp), lambda i: (0, 0)),    # conv weight: resident
                pl.BlockSpec((1, Fp), lambda i: (0, 0)),       # conv bias
                pl.BlockSpec((RB, NPB), lambda i: (0, 0)),     # pool matrix
                pl.BlockSpec((Fp, E), lambda i: (0, 0)),       # linear weight
                pl.BlockSpec((1, E), lambda i: (0, 0)),        # linear bias
            ],
            out_specs=pl.BlockSpec((RB, E), lambda i: (i, 0)),
            compiler_params=pltpu.CompilerParams(
                dimension_semantics=("parallel",)),
            cost_estimate=pl.CostEstimate(
                flops=flops, transcendentals=0,
                bytes_accessed=bytes_accessed),
        )(patches, wc_mat, bc_row, pool_mat, wl_mat, bl_row)

        if N_out != N:
            emb = emb[:N]
        # Row n = b*V + v  =>  this reshape IS torch.cat([y0, y1], dim=1).
        return emb.reshape(B, V * E)

    return forward


# ------------------------- pure-JAX reference ------------------------------ #

def _reference(x, params):
    wc, bc, wl, bl = params

    def enc(v):  # v: [B, C, H, W]
        conv = jax.lax.conv_general_dilated(
            v, wc, window_strides=(1, 1), padding="VALID",
            dimension_numbers=("NCHW", "OIHW", "NCHW"))
        conv = conv + bc[None, :, None, None]
        act = jnp.maximum(conv, 0.0)
        pooled = act.mean(axis=(2, 3))
        return pooled @ wl.T + bl

    return jnp.concatenate([enc(x[:, 0]), enc(x[:, 1])], axis=1)


# --------------------------------- main ------------------------------------ #

if __name__ == "__main__":
    B, C, H, W = 2, 4, 16, 16
    F, E, K = 32, 32, 3

    key = jax.random.PRNGKey(0)
    kx, kwc, kbc, kwl, kbl = jax.random.split(key, 5)

    x = jax.random.normal(kx, (B, 2, C, H, W), dtype=jnp.float32)

    # deterministic synthetic parameters (shapes match the torch layers)
    wc = 0.1 * jax.random.normal(kwc, (F, C, K, K), dtype=jnp.float32)
    bc = 0.1 * jax.random.normal(kbc, (F,), dtype=jnp.float32)
    wl = 0.1 * jax.random.normal(kwl, (E, F), dtype=jnp.float32)
    bl = 0.1 * jax.random.normal(kbl, (E,), dtype=jnp.float32)
    params = (wc, bc, wl, bl)

    encoder = make_view_pair_encoder(params, in_shape=(C, H, W))
    y = encoder(x)
    jax.block_until_ready(y)
    assert y.shape == (B, 2 * E), y.shape

    y_ref = _reference(x, params)
    # bf16 MXU operands with f32 accumulation -> slightly relaxed tolerance.
    np.testing.assert_allclose(np.asarray(y), np.asarray(y_ref),
                               rtol=2e-3, atol=3e-3)

    print("KERNEL_OK")
</pallas_src>

<mosaic_0001>
module attributes {stable_mosaic.version = 11 : i64} {
  func.func @_pair_encoder_kernel(%arg0: i32, %arg1: memref<784x128xbf16, #tpu.memory_space<vmem>>, %arg2: memref<128x128xbf16, #tpu.memory_space<vmem>>, %arg3: memref<1x128xf32, #tpu.memory_space<vmem>>, %arg4: memref<4x784xbf16, #tpu.memory_space<vmem>>, %arg5: memref<128x32xbf16, #tpu.memory_space<vmem>>, %arg6: memref<1x32xf32, #tpu.memory_space<vmem>>, %arg7: memref<4x32xf32, #tpu.memory_space<vmem>>) attributes {dimension_semantics = [#tpu.dimension_semantics<parallel>], iteration_bounds = array<i64: 1>, scalar_prefetch = 0 : i64, scratch_operands = 0 : i64, tpu.core_type = #tpu.core_type<tc>, window_params = [{transform_indices = @transform_0, window_bounds = array<i64: 784, 128>}, {pipeline_mode = #tpu.pipeline_mode<synchronous>, transform_indices = @transform_1, window_bounds = array<i64: 128, 128>}, {pipeline_mode = #tpu.pipeline_mode<synchronous>, transform_indices = @transform_2, window_bounds = array<i64: 1, 128>}, {pipeline_mode = #tpu.pipeline_mode<synchronous>, transform_indices = @transform_3, window_bounds = array<i64: 4, 784>}, {pipeline_mode = #tpu.pipeline_mode<synchronous>, transform_indices = @transform_4, window_bounds = array<i64: 128, 32>}, {pipeline_mode = #tpu.pipeline_mode<synchronous>, transform_indices = @transform_5, window_bounds = array<i64: 1, 32>}, {transform_indices = @transform_6, window_bounds = array<i64: 4, 32>}]} {
    %c0 = arith.constant 0 : index
    %c0_0 = arith.constant 0 : index
    %0 = vector.load %arg1[%c0, %c0_0] : memref<784x128xbf16, #tpu.memory_space<vmem>>, vector<784x128xbf16>
    %c0_1 = arith.constant 0 : index
    %c0_2 = arith.constant 0 : index
    %1 = vector.load %arg2[%c0_1, %c0_2] : memref<128x128xbf16, #tpu.memory_space<vmem>>, vector<128x128xbf16>
    %cst = arith.constant dense<0.000000e+00> : vector<784x128xf32>
    %2 = tpu.matmul %0, %1, %cst {dimension_numbers = #tpu.dot_dimension_numbers<[1], [0], [0], [1], [0, 0, 1, 1], [], []>} : vector<784x128xbf16>, vector<128x128xbf16>, vector<784x128xf32> -> vector<784x128xf32>
    %c0_3 = arith.constant 0 : index
    %c0_4 = arith.constant 0 : index
    %3 = vector.load %arg3[%c0_3, %c0_4] : memref<1x128xf32, #tpu.memory_space<vmem>>, vector<1x128xf32>
    %4 = vector.broadcast %3 : vector<1x128xf32> to vector<784x128xf32>
    %5 = arith.addf %2, %4 : vector<784x128xf32>
    %cst_5 = arith.constant 0.000000e+00 : f32
    %6 = vector.broadcast %cst_5 : f32 to vector<784x128xf32>
    %7 = arith.maximumf %5, %6 : vector<784x128xf32>
    %8 = arith.truncf %7 : vector<784x128xf32> to vector<784x128xbf16>
    %c0_6 = arith.constant 0 : index
    %c0_7 = arith.constant 0 : index
    %9 = vector.load %arg4[%c0_6, %c0_7] : memref<4x784xbf16, #tpu.memory_space<vmem>>, vector<4x784xbf16>
    %cst_8 = arith.constant dense<0.000000e+00> : vector<4x128xf32>
    %10 = tpu.matmul %9, %8, %cst_8 {dimension_numbers = #tpu.dot_dimension_numbers<[1], [0], [0], [1], [0, 0, 1, 1], [], []>} : vector<4x784xbf16>, vector<784x128xbf16>, vector<4x128xf32> -> vector<4x128xf32>
    %cst_9 = arith.constant 0.00510204071 : f32
    %11 = vector.broadcast %cst_9 : f32 to vector<4x128xf32>
    %12 = arith.mulf %10, %11 : vector<4x128xf32>
    %13 = arith.truncf %12 : vector<4x128xf32> to vector<4x128xbf16>
    %c0_10 = arith.constant 0 : index
    %c0_11 = arith.constant 0 : index
    %14 = vector.load %arg5[%c0_10, %c0_11] : memref<128x32xbf16, #tpu.memory_space<vmem>>, vector<128x32xbf16>
    %cst_12 = arith.constant dense<0.000000e+00> : vector<4x32xf32>
    %15 = tpu.matmul %13, %14, %cst_12 {dimension_numbers = #tpu.dot_dimension_numbers<[1], [0], [0], [1], [0, 0, 1, 1], [], []>} : vector<4x128xbf16>, vector<128x32xbf16>, vector<4x32xf32> -> vector<4x32xf32>
    %c0_13 = arith.constant 0 : index
    %c0_14 = arith.constant 0 : index
    %16 = vector.load %arg6[%c0_13, %c0_14] : memref<1x32xf32, #tpu.memory_space<vmem>>, vector<1x32xf32>
    %17 = vector.broadcast %16 : vector<1x32xf32> to vector<4x32xf32>
    %18 = arith.addf %15, %17 : vector<4x32xf32>
    %c0_15 = arith.constant 0 : index
    %c0_16 = arith.constant 0 : index
    %19 = vector.load %arg7[%c0_15, %c0_16] : memref<4x32xf32, #tpu.memory_space<vmem>>, vector<4x32xf32>
    tpu.vector_store %arg7[%c0_15, %c0_16], %18 {strides = array<i32>} : memref<4x32xf32, #tpu.memory_space<vmem>>, vector<4x32xf32>,
    return
  }
  func.func @transform_0(%arg0: i32) -> (i32, i32) {
    %c0_i32 = arith.constant 0 : i32
    %c0_i32_0 = arith.constant 0 : i32
    return %arg0, %c0_i32 : i32, i32
  }
  func.func @transform_1(%arg0: i32) -> (i32, i32) {
    %c0_i32 = arith.constant 0 : i32
    %c0_i32_0 = arith.constant 0 : i32
    %c0_i32_1 = arith.constant 0 : i32
    return %c0_i32, %c0_i32_0 : i32, i32
  }
  func.func @transform_2(%arg0: i32) -> (i32, i32) {
    %c0_i32 = arith.constant 0 : i32
    %c0_i32_0 = arith.constant 0 : i32
    %c0_i32_1 = arith.constant 0 : i32
    return %c0_i32, %c0_i32_0 : i32, i32
  }
  func.func @transform_3(%arg0: i32) -> (i32, i32) {
    %c0_i32 = arith.constant 0 : i32
    %c0_i32_0 = arith.constant 0 : i32
    %c0_i32_1 = arith.constant 0 : i32
    return %c0_i32, %c0_i32_0 : i32, i32
  }
  func.func @transform_4(%arg0: i32) -> (i32, i32) {
    %c0_i32 = arith.constant 0 : i32
    %c0_i32_0 = arith.constant 0 : i32
    %c0_i32_1 = arith.constant 0 : i32
    return %c0_i32, %c0_i32_0 : i32, i32
  }
  func.func @transform_5(%arg0: i32) -> (i32, i32) {
    %c0_i32 = arith.constant 0 : i32
    %c0_i32_0 = arith.constant 0 : i32
    %c0_i32_1 = arith.constant 0 : i32
    return %c0_i32, %c0_i32_0 : i32, i32
  }
  func.func @transform_6(%arg0: i32) -> (i32, i32) {
    %c0_i32 = arith.constant 0 : i32
    %c0_i32_0 = arith.constant 0 : i32
    return %arg0, %c0_i32 : i32, i32
  }
}

</mosaic_0001>

<llo_original>
// kernel: forward.1
$region0: #{forward.1}
  #allocation0 [shape = 'u32[]', space=smem, size = 0x4, offset = 0x4, fixed_abs, tag = 'smem constant byte address 0x4 - core index']
  #allocation1 [shape = 'u32[144,128]{1,0:T(1,128)}', space=vmem, size = 0x12000, scoped, tag = 'internal scratch']
  %s0 = inlined_call_operand.vmem [shape: bf16[784,128], index: 0, kind: input, shape index: {}]
  %s1 = inlined_call_operand.vmem [shape: bf16[128,128], index: 1, kind: input, shape index: {}]
  %s2 = inlined_call_operand.vmem [shape: f32[1,128], index: 2, kind: input, shape index: {}]
  %s3 = inlined_call_operand.vmem [shape: bf16[4,784], index: 3, kind: input, shape index: {}]
  %s4 = inlined_call_operand.vmem [shape: bf16[128,32], index: 4, kind: input, shape index: {}]
  %s5 = inlined_call_operand.vmem [shape: f32[1,32], index: 5, kind: input, shape index: {}]
  %s6 = inlined_call_operand.vmem [shape: f32[4,32], index: 6, kind: output, shape index: {}]
  %s7 = sld [smem:[#allocation0]]
  $region34: #{forward.1} parent=0
    _
  %s9 = ssub.s32 1, %s7
  %s10 = scalar_select 0, %s9, %s7
  // Predicated region
  $region2: #{forward.1} parent=0 // pred_check
    _
  $region3: #{forward.1} parent=0 // pred_check_branch
    %12 = sbr.rel (0) target = $region5
  $region4: #{forward.1} parent=0 // pred_region
    _
  $region5: #{forward.1} parent=0 // pred_fallthru
    _
  // Predicated region
  $region6: #{forward.1} parent=0 // pred_check
    _
  $region7: #{forward.1} parent=0 // pred_check_branch
    %14 = sbr.rel (0) target = $region9
  $region8: #{forward.1} parent=0 // pred_region
    _
  $region9: #{forward.1} parent=0 // pred_fallthru
    _
  // Predicated region
  $region10: #{forward.1} parent=0 // pred_check
    _
  $region11: #{forward.1} parent=0 // pred_check_branch
    %16 = sbr.rel (0) target = $region13
  $region12: #{forward.1} parent=0 // pred_region
    _
  $region13: #{forward.1} parent=0 // pred_fallthru
    _
  // Predicated region
  $region14: #{forward.1} parent=0 // pred_check
    _
  $region15: #{forward.1} parent=0 // pred_check_branch
    %18 = sbr.rel (0) target = $region17
  $region16: #{forward.1} parent=0 // pred_region
    _
  $region17: #{forward.1} parent=0 // pred_fallthru
    _
  // Predicated region
  $region18: #{forward.1} parent=0 // pred_check
    _
  $region19: #{forward.1} parent=0 // pred_check_branch
    %20 = sbr.rel (0) target = $region21
  $region20: #{forward.1} parent=0 // pred_region
    _
  $region21: #{forward.1} parent=0 // pred_fallthru
    _
  // Predicated region
  $region22: #{forward.1} parent=0 // pred_check
    _
  $region23: #{forward.1} parent=0 // pred_check_branch
    %22 = sbr.rel (0) target = $region25
  $region24: #{forward.1} parent=0 // pred_region
    _
  $region25: #{forward.1} parent=0 // pred_fallthru
    _
  %v24 = vld [vmem:[%s0] sm:$0xf]
  %v25 = vld [vmem:[%s0 + $0x4] sm:$0xf]
  %v26 = vld [vmem:[%s0 + $0x8] sm:$0xf]
  %v27 = vld [vmem:[%s0 + $0xc] sm:$0xf]
  %v28 = vld [vmem:[%s0 + $0x10] sm:$0xf]
  %v29 = vld [vmem:[%s0 + $0x14] sm:$0xf]
  %v30 = vld [vmem:[%s0 + $0x18] sm:$0xf]
  %v31 = vld [vmem:[%s0 + $0x1c] sm:$0xf]
  %v32 = vld [vmem:[%s0 + $0x20] sm:$0xf]
  %v33 = vld [vmem:[%s0 + $0x24] sm:$0xf]
  %v34 = vld [vmem:[%s0 + $0x28] sm:$0xf]
  %v35 = vld [vmem:[%s0 + $0x2c] sm:$0xf]
  %v36 = vld [vmem:[%s0 + $0x30] sm:$0xf]
  %v37 = vld [vmem:[%s0 + $0x34] sm:$0xf]
  %v38 = vld [vmem:[%s0 + $0x38] sm:$0xf]
  %v39 = vld [vmem:[%s0 + $0x3c] sm:$0xf]
  %v40 = vld [vmem:[%s0 + $0x40] sm:$0xf]
  %v41 = vld [vmem:[%s0 + $0x44] sm:$0xf]
  %v42 = vld [vmem:[%s0 + $0x48] sm:$0xf]
  %v43 = vld [vmem:[%s0 + $0x4c] sm:$0xf]
  %v44 = vld [vmem:[%s0 + $0x50] sm:$0xf]
  %v45 = vld [vmem:[%s0 + $0x54] sm:$0xf]
  %v46 = vld [vmem:[%s0 + $0x58] sm:$0xf]
  %v47 = vld [vmem:[%s0 + $0x5c] sm:$0xf]
  %v48 = vld [vmem:[%s0 + $0x60] sm:$0xf]
  %v49 = vld [vmem:[%s0 + $0x64] sm:$0xf]
  %v50 = vld [vmem:[%s0 + $0x68] sm:$0xf]
  %v51 = vld [vmem:[%s0 + $0x6c] sm:$0xf]
  %v52 = vld [vmem:[%s0 + $0x70] sm:$0xf]
  %v53 = vld [vmem:[%s0 + $0x74] sm:$0xf]
  %v54 = vld [vmem:[%s0 + $0x78] sm:$0xf]
  %v55 = vld [vmem:[%s0 + $0x7c] sm:$0xf]
  %v56 = vld [vmem:[%s0 + $0x80] sm:$0xf]
  %v57 = vld [vmem:[%s0 + $0x84] sm:$0xf]
  %v58 = vld [vmem:[%s0 + $0x88] sm:$0xf]
  %v59 = vld [vmem:[%s0 + $0x8c] sm:$0xf]
  %v60 = vld [vmem:[%s0 + $0x90] sm:$0xf]
  %v61 = vld [vmem:[%s0 + $0x94] sm:$0xf]
  %v62 = vld [vmem:[%s0 + $0x98] sm:$0xf]
  %v63 = vld [vmem:[%s0 + $0x9c] sm:$0xf]
  %v64 = vld [vmem:[%s0 + $0xa0] sm:$0xf]
  %v65 = vld [vmem:[%s0 + $0xa4] sm:$0xf]
  %v66 = vld [vmem:[%s0 + $0xa8] sm:$0xf]
  %v67 = vld [vmem:[%s0 + $0xac] sm:$0xf]
  %v68 = vld [vmem:[%s0 + $0xb0] sm:$0xf]
  %v69 = vld [vmem:[%s0 + $0xb4] sm:$0xf]
  %v70 = vld [vmem:[%s0 + $0xb8] sm:$0xf]
  %v71 = vld [vmem:[%s0 + $0xbc] sm:$0xf]
  %v72 = vld [vmem:[%s0 + $0xc0] sm:$0xf]
  %v73 = vld [vmem:[%s0 + $0xc4] sm:$0xf]
  %v74 = vld [vmem:[%s0 + $0xc8] sm:$0xf]
  %v75 = vld [vmem:[%s0 + $0xcc] sm:$0xf]
  %v76 = vld [vmem:[%s0 + $0xd0] sm:$0xf]
  %v77 = vld [vmem:[%s0 + $0xd4] sm:$0xf]
  %v78 = vld [vmem:[%s0 + $0xd8] sm:$0xf]
  %v79 = vld [vmem:[%s0 + $0xdc] sm:$0xf]
  %v80 = vld [vmem:[%s0 + $0xe0] sm:$0xf]
  %v81 = vld [vmem:[%s0 + $0xe4] sm:$0xf]
  %v82 = vld [vmem:[%s0 + $0xe8] sm:$0xf]
  %v83 = vld [vmem:[%s0 + $0xec] sm:$0xf]
  %v84 = vld [vmem:[%s0 + $0xf0] sm:$0xf]
  %v85 = vld [vmem:[%s0 + $0xf4] sm:$0xf]
  %v86 = vld [vmem:[%s0 + $0xf8] sm:$0xf]
  %v87 = vld [vmem:[%s0 + $0xfc] sm:$0xf]
  %v88 = vld [vmem:[%s0 + $0x100] sm:$0xf]
  %v89 = vld [vmem:[%s0 + $0x104] sm:$0xf]
  %v90 = vld [vmem:[%s0 + $0x108] sm:$0xf]
  %v91 = vld [vmem:[%s0 + $0x10c] sm:$0xf]
  %v92 = vld [vmem:[%s0 + $0x110] sm:$0xf]
  %v93 = vld [vmem:[%s0 + $0x114] sm:$0xf]
  %v94 = vld [vmem:[%s0 + $0x118] sm:$0xf]
  %v95 = vld [vmem:[%s0 + $0x11c] sm:$0xf]
  %v96 = vld [vmem:[%s0 + $0x120] sm:$0xf]
  %v97 = vld [vmem:[%s0 + $0x124] sm:$0xf]
  %v98 = vld [vmem:[%s0 + $0x128] sm:$0xf]
  %v99 = vld [vmem:[%s0 + $0x12c] sm:$0xf]
  %v100 = vld [vmem:[%s0 + $0x130] sm:$0xf]
  %v101 = vld [vmem:[%s0 + $0x134] sm:$0xf]
  %v102 = vld [vmem:[%s0 + $0x138] sm:$0xf]
  %v103 = vld [vmem:[%s0 + $0x13c] sm:$0xf]
  %v104 = vld [vmem:[%s0 + $0x140] sm:$0xf]
  %v105 = vld [vmem:[%s0 + $0x144] sm:$0xf]
  %v106 = vld [vmem:[%s0 + $0x148] sm:$0xf]
  %v107 = vld [vmem:[%s0 + $0x14c] sm:$0xf]
  %v108 = vld [vmem:[%s0 + $0x150] sm:$0xf]
  %v109 = vld [vmem:[%s0 + $0x154] sm:$0xf]
  %v110 = vld [vmem:[%s0 + $0x158] sm:$0xf]
  %v111 = vld [vmem:[%s0 + $0x15c] sm:$0xf]
  %v112 = vld [vmem:[%s0 + $0x160] sm:$0xf]
  %v113 = vld [vmem:[%s0 + $0x164] sm:$0xf]
  %v114 = vld [vmem:[%s0 + $0x168] sm:$0xf]
  %v115 = vld [vmem:[%s0 + $0x16c] sm:$0xf]
  %v116 = vld [vmem:[%s0 + $0x170] sm:$0xf]
  %v117 = vld [vmem:[%s0 + $0x174] sm:$0xf]
  %v118 = vld [vmem:[%s0 + $0x178] sm:$0xf]
  %v119 = vld [vmem:[%s0 + $0x17c] sm:$0xf]
  %v120 = vld [vmem:[%s0 + $0x180] sm:$0xf]
  %v121 = vld [vmem:[%s0 + $0x184] sm:$0xf]
  %v122 = vld [vmem:[%s1] sm:$0xf]
  %v123 = vld [vmem:[%s1 + $0x4] sm:$0xf]
  %v124 = vld [vmem:[%s1 + $0x8] sm:$0xf]
  %v125 = vld [vmem:[%s1 + $0xc] sm:$0xf]
  %v126 = vld [vmem:[%s1 + $0x10] sm:$0xf]
  %v127 = vld [vmem:[%s1 + $0x14] sm:$0xf]
  %v128 = vld [vmem:[%s1 + $0x18] sm:$0xf]
  %v129 = vld [vmem:[%s1 + $0x1c] sm:$0xf]
  %v130 = vld [vmem:[%s1 + $0x20] sm:$0xf]
  %v131 = vld [vmem:[%s1 + $0x24] sm:$0xf]
  %v132 = vld [vmem:[%s1 + $0x28] sm:$0xf]
  %v133 = vld [vmem:[%s1 + $0x2c] sm:$0xf]
  %v134 = vld [vmem:[%s1 + $0x30] sm:$0xf]
  %v135 = vld [vmem:[%s1 + $0x34] sm:$0xf]
  %v136 = vld [vmem:[%s1 + $0x38] sm:$0xf]
  %v137 = vld [vmem:[%s1 + $0x3c] sm:$0xf]
  %v138 = vld [vmem:[%s2] sm:$0x1]
  %v140 = vlaneseq
  %v141 = vshrl.u32 %v140, 7
  %v142 = vsub.s32 0, %v141
  %v143 = vrot.slane %v138, %v142
  %v243 = vunpack.c.l.b16 %v24
  %v244 = vunpack.c.l.b16 %v25
  %v245 = vunpack.c.l.b16 %v26
  %v246 = vunpack.c.l.b16 %v27
  %v247 = vunpack.c.l.b16 %v28
  %v248 = vunpack.c.l.b16 %v29
  %v249 = vunpack.c.l.b16 %v30
  %v250 = vunpack.c.l.b16 %v31
  %v251 = vunpack.c.l.b16 %v32
  %v252 = vunpack.c.l.b16 %v33
  %v253 = vunpack.c.l.b16 %v34
  %v254 = vunpack.c.l.b16 %v35
  %v255 = vunpack.c.l.b16 %v36
  %v256 = vunpack.c.l.b16 %v37
  %v257 = vunpack.c.l.b16 %v38
  %v258 = vunpack.c.l.b16 %v39
  %v259 = vunpack.c.l.b16 %v40
  %v260 = vunpack.c.l.b16 %v41
  %v261 = vunpack.c.l.b16 %v42
  %v262 = vunpack.c.l.b16 %v43
  %v263 = vunpack.c.l.b16 %v44
  %v264 = vunpack.c.l.b16 %v45
  %v265 = vunpack.c.l.b16 %v46
  %v266 = vunpack.c.l.b16 %v47
  %v267 = vunpack.c.l.b16 %v48
  %v268 = vunpack.c.l.b16 %v49
  %v269 = vunpack.c.l.b16 %v50
  %v270 = vunpack.c.l.b16 %v51
  %v271 = vunpack.c.l.b16 %v52
  %v272 = vunpack.c.l.b16 %v53
  %v273 = vunpack.c.l.b16 %v54
  %v274 = vunpack.c.l.b16 %v55
  %v275 = vunpack.c.l.b16 %v56
  %v276 = vunpack.c.l.b16 %v57
  %v277 = vunpack.c.l.b16 %v58
  %v278 = vunpack.c.l.b16 %v59
  %v279 = vunpack.c.l.b16 %v60
  %v280 = vunpack.c.l.b16 %v61
  %v281 = vunpack.c.l.b16 %v62
  %v282 = vunpack.c.l.b16 %v63
  %v283 = vunpack.c.l.b16 %v64
  %v284 = vunpack.c.l.b16 %v65
  %v285 = vunpack.c.l.b16 %v66
  %v286 = vunpack.c.l.b16 %v67
  %v287 = vunpack.c.l.b16 %v68
  %v288 = vunpack.c.l.b16 %v69
  %v289 = vunpack.c.l.b16 %v70
  %v290 = vunpack.c.l.b16 %v71
  %v291 = vunpack.c.l.b16 %v72
  %v292 = vunpack.c.l.b16 %v73
  %v293 = vunpack.c.l.b16 %v74
  %v294 = vunpack.c.l.b16 %v75
  %v295 = vunpack.c.l.b16 %v76
  %v296 = vunpack.c.l.b16 %v77
  %v297 = vunpack.c.l.b16 %v78
  %v298 = vunpack.c.l.b16 %v79
  %v299 = vunpack.c.l.b16 %v80
  %v300 = vunpack.c.l.b16 %v81
  %v301 = vunpack.c.l.b16 %v82
  %v302 = vunpack.c.l.b16 %v83
  %v303 = vunpack.c.l.b16 %v84
  %v304 = vunpack.c.l.b16 %v85
  %v305 = vunpack.c.l.b16 %v86
  %v306 = vunpack.c.l.b16 %v87
  %v307 = vunpack.c.l.b16 %v88
  %v308 = vunpack.c.l.b16 %v89
  %v309 = vunpack.c.l.b16 %v90
  %v310 = vunpack.c.l.b16 %v91
  %v311 = vunpack.c.l.b16 %v92
  %v312 = vunpack.c.l.b16 %v93
  %v313 = vunpack.c.l.b16 %v94
  %v314 = vunpack.c.l.b16 %v95
  %v315 = vunpack.c.l.b16 %v96
  %v316 = vunpack.c.l.b16 %v97
  %v317 = vunpack.c.l.b16 %v98
  %v318 = vunpack.c.l.b16 %v99
  %v319 = vunpack.c.l.b16 %v100
  %v320 = vunpack.c.l.b16 %v101
  %v321 = vunpack.c.l.b16 %v102
  %v322 = vunpack.c.l.b16 %v103
  %v323 = vunpack.c.l.b16 %v104
  %v324 = vunpack.c.l.b16 %v105
  %v325 = vunpack.c.l.b16 %v106
  %v326 = vunpack.c.l.b16 %v107
  %v327 = vunpack.c.l.b16 %v108
  %v328 = vunpack.c.l.b16 %v109
  %v329 = vunpack.c.l.b16 %v110
  %v330 = vunpack.c.l.b16 %v111
  %v331 = vunpack.c.l.b16 %v112
  %v332 = vunpack.c.l.b16 %v113
  %v333 = vunpack.c.l.b16 %v114
  %v334 = vunpack.c.l.b16 %v115
  %v335 = vunpack.c.l.b16 %v116
  %v336 = vunpack.c.l.b16 %v117
  %v337 = vunpack.c.l.b16 %v118
  %v338 = vunpack.c.l.b16 %v119
  %v339 = vunpack.c.l.b16 %v120
  %v340 = vunpack.c.l.b16 %v121
  %v341 = vpack.c.b16 %v244, %v243
  %v342 = vpack.c.b16 %v246, %v245
  %v343 = vpack.c.b16 %v248, %v247
  %v344 = vpack.c.b16 %v250, %v249
  %v345 = vpack.c.b16 %v252, %v251
  %v346 = vpack.c.b16 %v254, %v253
  %v347 = vpack.c.b16 %v256, %v255
  %v348 = vpack.c.b16 %v258, %v257
  %v349 = vpack.c.b16 %v260, %v259
  %v350 = vpack.c.b16 %v262, %v261
  %v351 = vpack.c.b16 %v264, %v263
  %v352 = vpack.c.b16 %v266, %v265
  %v353 = vpack.c.b16 %v268, %v267
  %v354 = vpack.c.b16 %v270, %v269
  %v355 = vpack.c.b16 %v272, %v271
  %v356 = vpack.c.b16 %v274, %v273
  %v357 = vpack.c.b16 %v276, %v275
  %v358 = vpack.c.b16 %v278, %v277
  %v359 = vpack.c.b16 %v280, %v279
  %v360 = vpack.c.b16 %v282, %v281
  %v361 = vpack.c.b16 %v284, %v283
  %v362 = vpack.c.b16 %v286, %v285
  %v363 = vpack.c.b16 %v288, %v287
  %v364 = vpack.c.b16 %v290, %v289
  %v365 = vpack.c.b16 %v292, %v291
  %v366 = vpack.c.b16 %v294, %v293
  %v367 = vpack.c.b16 %v296, %v295
  %v368 = vpack.c.b16 %v298, %v297
  %v369 = vpack.c.b16 %v300, %v299
  %v370 = vpack.c.b16 %v302, %v301
  %v371 = vpack.c.b16 %v304, %v303
  %v372 = vpack.c.b16 %v306, %v305
  %v373 = vpack.c.b16 %v308, %v307
  %v374 = vpack.c.b16 %v310, %v309
  %v375 = vpack.c.b16 %v312, %v311
  %v376 = vpack.c.b16 %v314, %v313
  %v377 = vpack.c.b16 %v316, %v315
  %v378 = vpack.c.b16 %v318, %v317
  %v379 = vpack.c.b16 %v320, %v319
  %v380 = vpack.c.b16 %v322, %v321
  %v381 = vpack.c.b16 %v324, %v323
  %v382 = vpack.c.b16 %v326, %v325
  %v383 = vpack.c.b16 %v328, %v327
  %v384 = vpack.c.b16 %v330, %v329
  %v385 = vpack.c.b16 %v332, %v331
  %v386 = vpack.c.b16 %v334, %v333
  %v387 = vpack.c.b16 %v336, %v335
  %v388 = vpack.c.b16 %v338, %v337
  %v389 = vpack.c.b16 %v340, %v339
  %v455 = vunpack.c.l.b16 %v122
  %v456 = vunpack.c.l.b16 %v123
  %v457 = vunpack.c.l.b16 %v124
  %v458 = vunpack.c.l.b16 %v125
  %v459 = vunpack.c.l.b16 %v126
  %v460 = vunpack.c.l.b16 %v127
  %v461 = vunpack.c.l.b16 %v128
  %v462 = vunpack.c.l.b16 %v129
  %v463 = vunpack.c.l.b16 %v130
  %v464 = vunpack.c.l.b16 %v131
  %v465 = vunpack.c.l.b16 %v132
  %v466 = vunpack.c.l.b16 %v133
  %v467 = vunpack.c.l.b16 %v134
  %v468 = vunpack.c.l.b16 %v135
  %v469 = vunpack.c.l.b16 %v136
  %v470 = vunpack.c.l.b16 %v137
  %v471 = vpack.c.b16 %v456, %v455
  %v472 = vpack.c.b16 %v458, %v457
  %v473 = vpack.c.b16 %v460, %v459
  %v474 = vpack.c.b16 %v462, %v461
  %v475 = vpack.c.b16 %v464, %v463
  %v476 = vpack.c.b16 %v466, %v465
  %v477 = vpack.c.b16 %v468, %v467
  %v478 = vpack.c.b16 %v470, %v469
  %487 = vmatprep.subr.bf16.mxu0 0
  %488 = vmatpush1.bf16.msra.mxu0 %v478
  %489 = vmatprep.subr.bf16.mxu0 0
  %490 = vmatpush1.bf16.msra.mxu0 %v477
  %491 = vmatprep.subr.bf16.mxu0 0
  %492 = vmatpush1.bf16.msra.mxu0 %v476
  %493 = vmatprep.subr.bf16.mxu0 0
  %494 = vmatpush1.bf16.msra.mxu0 %v475
  %495 = vmatprep.subr.bf16.mxu0 0
  %496 = vmatpush1.bf16.msra.mxu0 %v474
  %497 = vmatprep.subr.bf16.mxu0 0
  %498 = vmatpush1.bf16.msra.mxu0 %v473
  %499 = vmatprep.subr.bf16.mxu0 0
  %500 = vmatpush1.bf16.msra.mxu0 %v472
  %501 = vmatprep.subr.bf16.mxu0 0
  %502 = vmatpush1.bf16.msra.mxu0 %v471
  %503 = vmatprep.subr.bf16.mxu0 0
  %504 = vmatpush2.bf16.msra.mxu0 0
  %505 = vmatprep.subr.bf16.mxu0 0
  %506 = vmatpush2.bf16.msra.mxu0 0
  %507 = vmatprep.subr.bf16.mxu0 0
  %508 = vmatpush2.bf16.msra.mxu0 0
  %509 = vmatprep.subr.bf16.mxu0 0
  %510 = vmatpush2.bf16.msra.mxu0 0
  %511 = vmatprep.subr.bf16.mxu0 0
  %512 = vmatpush2.bf16.msra.mxu0 0
  %513 = vmatprep.subr.bf16.mxu0 0
  %514 = vmatpush2.bf16.msra.mxu0 0
  %515 = vmatprep.subr.bf16.mxu0 0
  %516 = vmatpush2.bf16.msra.mxu0 0
  %517 = vmatprep.subr.bf16.mxu0 0
  %518 = vmatpush2.bf16.msra.mxu0 0
  %519 = vmatprep.mubr.bf16.mxu0 0
  %520 = vmatmul.mubr.bf16.gmra.mxu0 %v341
  %v521 = vpop.f32.mrf.mxu0
  %v522 = vadd.f32 %v143, %v521
  %v523 = vpop.f32.mrf.mxu0
  %v524 = vpop.f32.mrf.mxu0
  %v525 = vadd.f32 %v143, %v524
  %v526 = vpop.f32.mrf.mxu0
  %527 = vmatprep.mubr.bf16.mxu0 0
  %528 = vmatmul.mubr.bf16.gmra.mxu0 %v342
  %v529 = vpop.f32.mrf.mxu0
  %v530 = vadd.f32 %v143, %v529
  %v531 = vpop.f32.mrf.mxu0
  %v532 = vpop.f32.mrf.mxu0
  %v533 = vadd.f32 %v143, %v532
  %v534 = vpop.f32.mrf.mxu0
  %535 = vmatprep.mubr.bf16.mxu0 0
  %536 = vmatmul.mubr.bf16.gmra.mxu0 %v343
  %v537 = vpop.f32.mrf.mxu0
  %v538 = vadd.f32 %v143, %v537
  %v539 = vpop.f32.mrf.mxu0
  %v540 = vpop.f32.mrf.mxu0
  %v541 = vadd.f32 %v143, %v540
  %v542 = vpop.f32.mrf.mxu0
  %543 = vmatprep.mubr.bf16.mxu0 0
  %544 = vmatmul.mubr.bf16.gmra.mxu0 %v344
  %v545 = vpop.f32.mrf.mxu0
  %v546 = vadd.f32 %v143, %v545
  %v547 = vpop.f32.mrf.mxu0
  %v548 = vpop.f32.mrf.mxu0
  %v549 = vadd.f32 %v143, %v548
  %v550 = vpop.f32.mrf.mxu0
  %551 = vmatprep.mubr.bf16.mxu0 0
  %552 = vmatmul.mubr.bf16.gmra.mxu0 %v345
  %v553 = vpop.f32.mrf.mxu0
  %v554 = vadd.f32 %v143, %v553
  %v555 = vpop.f32.mrf.mxu0
  %v556 = vpop.f32.mrf.mxu0
  %v557 = vadd.f32 %v143, %v556
  %v558 = vpop.f32.mrf.mxu0
  %559 = vmatprep.mubr.bf16.mxu0 0
  %560 = vmatmul.mubr.bf16.gmra.mxu0 %v346
  %v561 = vpop.f32.mrf.mxu0
  %v562 = vadd.f32 %v143, %v561
  %v563 = vpop.f32.mrf.mxu0
  %v564 = vpop.f32.mrf.mxu0
  %v565 = vadd.f32 %v143, %v564
  %v566 = vpop.f32.mrf.mxu0
  %567 = vmatprep.mubr.bf16.mxu0 0
  %568 = vmatmul.mubr.bf16.gmra.mxu0 %v347
  %v569 = vpop.f32.mrf.mxu0
  %v570 = vadd.f32 %v143, %v569
  %v571 = vpop.f32.mrf.mxu0
  %v572 = vpop.f32.mrf.mxu0
  %v573 = vadd.f32 %v143, %v572
  %v574 = vpop.f32.mrf.mxu0
  %575 = vmatprep.mubr.bf16.mxu0 0
  %576 = vmatmul.mubr.bf16.gmra.mxu0 %v348
  %v577 = vpop.f32.mrf.mxu0
  %v578 = vadd.f32 %v143, %v577
  %v579 = vpop.f32.mrf.mxu0
  %v580 = vpop.f32.mrf.mxu0
  %v581 = vadd.f32 %v143, %v580
  %v582 = vpop.f32.mrf.mxu0
  %583 = vmatprep.mubr.bf16.mxu0 0
  %584 = vmatmul.mubr.bf16.gmra.mxu0 %v349
  %v585 = vpop.f32.mrf.mxu0
  %v586 = vadd.f32 %v143, %v585
  %v587 = vpop.f32.mrf.mxu0
  %v588 = vpop.f32.mrf.mxu0
  %v589 = vadd.f32 %v143, %v588
  %v590 = vpop.f32.mrf.mxu0
  %591 = vmatprep.mubr.bf16.mxu0 0
  %592 = vmatmul.mubr.bf16.gmra.mxu0 %v350
  %v593 = vpop.f32.mrf.mxu0
  %v594 = vadd.f32 %v143, %v593
  %v595 = vpop.f32.mrf.mxu0
  %v596 = vpop.f32.mrf.mxu0
  %v597 = vadd.f32 %v143, %v596
  %v598 = vpop.f32.mrf.mxu0
  %599 = vmatprep.mubr.bf16.mxu0 0
  %600 = vmatmul.mubr.bf16.gmra.mxu0 %v351
  %v601 = vpop.f32.mrf.mxu0
  %v602 = vadd.f32 %v143, %v601
  %v603 = vpop.f32.mrf.mxu0
  %v604 = vpop.f32.mrf.mxu0
  %v605 = vadd.f32 %v143, %v604
  %v606 = vpop.f32.mrf.mxu0
  %607 = vmatprep.mubr.bf16.mxu0 0
  %608 = vmatmul.mubr.bf16.gmra.mxu0 %v352
  %v609 = vpop.f32.mrf.mxu0
  %v610 = vadd.f32 %v143, %v609
  %v611 = vpop.f32.mrf.mxu0
  %v612 = vpop.f32.mrf.mxu0
  %v613 = vadd.f32 %v143, %v612
  %v614 = vpop.f32.mrf.mxu0
  %615 = vmatprep.mubr.bf16.mxu0 0
  %616 = vmatmul.mubr.bf16.gmra.mxu0 %v353
  %v617 = vpop.f32.mrf.mxu0
  %v618 = vadd.f32 %v143, %v617
  %v619 = vpop.f32.mrf.mxu0
  %v620 = vpop.f32.mrf.mxu0
  %v621 = vadd.f32 %v143, %v620
  %v622 = vpop.f32.mrf.mxu0
  %623 = vmatprep.mubr.bf16.mxu0 0
  %624 = vmatmul.mubr.bf16.gmra.mxu0 %v354
  %v625 = vpop.f32.mrf.mxu0
  %v626 = vadd.f32 %v143, %v625
  %v627 = vpop.f32.mrf.mxu0
  %v628 = vpop.f32.mrf.mxu0
  %v629 = vadd.f32 %v143, %v628
  %v630 = vpop.f32.mrf.mxu0
  %631 = vmatprep.mubr.bf16.mxu0 0
  %632 = vmatmul.mubr.bf16.gmra.mxu0 %v355
  %v633 = vpop.f32.mrf.mxu0
  %v634 = vadd.f32 %v143, %v633
  %v635 = vpop.f32.mrf.mxu0
  %v636 = vpop.f32.mrf.mxu0
  %v637 = vadd.f32 %v143, %v636
  %v638 = vpop.f32.mrf.mxu0
  %639 = vmatprep.mubr.bf16.mxu0 0
  %640 = vmatmul.mubr.bf16.gmra.mxu0 %v356
  %v641 = vpop.f32.mrf.mxu0
  %v642 = vadd.f32 %v143, %v641
  %v643 = vpop.f32.mrf.mxu0
  %v644 = vpop.f32.mrf.mxu0
  %v645 = vadd.f32 %v143, %v644
  %v646 = vpop.f32.mrf.mxu0
  %647 = vmatprep.mubr.bf16.mxu0 0
  %648 = vmatmul.mubr.bf16.gmra.mxu0 %v357
  %v649 = vpop.f32.mrf.mxu0
  %v650 = vadd.f32 %v143, %v649
  %v651 = vpop.f32.mrf.mxu0
  %v652 = vpop.f32.mrf.mxu0
  %v653 = vadd.f32 %v143, %v652
  %v654 = vpop.f32.mrf.mxu0
  %655 = vmatprep.mubr.bf16.mxu0 0
  %656 = vmatmul.mubr.bf16.gmra.mxu0 %v358
  %v657 = vpop.f32.mrf.mxu0
  %v658 = vadd.f32 %v143, %v657
  %v659 = vpop.f32.mrf.mxu0
  %v660 = vpop.f32.mrf.mxu0
  %v661 = vadd.f32 %v143, %v660
  %v662 = vpop.f32.mrf.mxu0
  %663 = vmatprep.mubr.bf16.mxu0 0
  %664 = vmatmul.mubr.bf16.gmra.mxu0 %v359
  %v665 = vpop.f32.mrf.mxu0
  %v666 = vadd.f32 %v143, %v665
  %v667 = vpop.f32.mrf.mxu0
  %v668 = vpop.f32.mrf.mxu0
  %v669 = vadd.f32 %v143, %v668
  %v670 = vpop.f32.mrf.mxu0
  %671 = vmatprep.mubr.bf16.mxu0 0
  %672 = vmatmul.mubr.bf16.gmra.mxu0 %v360
  %v673 = vpop.f32.mrf.mxu0
  %v674 = vadd.f32 %v143, %v673
  %v675 = vpop.f32.mrf.mxu0
  %v676 = vpop.f32.mrf.mxu0
  %v677 = vadd.f32 %v143, %v676
  %v678 = vpop.f32.mrf.mxu0
  %679 = vmatprep.mubr.bf16.mxu0 0
  %680 = vmatmul.mubr.bf16.gmra.mxu0 %v361
  %v681 = vpop.f32.mrf.mxu0
  %v682 = vadd.f32 %v143, %v681
  %v683 = vpop.f32.mrf.mxu0
  %v684 = vpop.f32.mrf.mxu0
  %v685 = vadd.f32 %v143, %v684
  %v686 = vpop.f32.mrf.mxu0
  %687 = vmatprep.mubr.bf16.mxu0 0
  %688 = vmatmul.mubr.bf16.gmra.mxu0 %v362
  %v689 = vpop.f32.mrf.mxu0
  %v690 = vadd.f32 %v143, %v689
  %v691 = vpop.f32.mrf.mxu0
  %v692 = vpop.f32.mrf.mxu0
  %v693 = vadd.f32 %v143, %v692
  %v694 = vpop.f32.mrf.mxu0
  %695 = vmatprep.mubr.bf16.mxu0 0
  %696 = vmatmul.mubr.bf16.gmra.mxu0 %v363
  %v697 = vpop.f32.mrf.mxu0
  %v698 = vadd.f32 %v143, %v697
  %v699 = vpop.f32.mrf.mxu0
  %v700 = vpop.f32.mrf.mxu0
  %v701 = vadd.f32 %v143, %v700
  %v702 = vpop.f32.mrf.mxu0
  %703 = vmatprep.mubr.bf16.mxu0 0
  %704 = vmatmul.mubr.bf16.gmra.mxu0 %v364
  %v705 = vpop.f32.mrf.mxu0
  %v706 = vadd.f32 %v143, %v705
  %v707 = vpop.f32.mrf.mxu0
  %v708 = vpop.f32.mrf.mxu0
  %v709 = vadd.f32 %v143, %v708
  %v710 = vpop.f32.mrf.mxu0
  %711 = vmatprep.mubr.bf16.mxu0 0
  %712 = vmatmul.mubr.bf16.gmra.mxu0 %v365
  %v713 = vpop.f32.mrf.mxu0
  %v714 = vadd.f32 %v143, %v713
  %v715 = vpop.f32.mrf.mxu0
  %v716 = vpop.f32.mrf.mxu0
  %v717 = vadd.f32 %v143, %v716
  %v718 = vpop.f32.mrf.mxu0
  %719 = vmatprep.mubr.bf16.mxu0 0
  %720 = vmatmul.mubr.bf16.gmra.mxu0 %v366
  %v721 = vpop.f32.mrf.mxu0
  %v722 = vadd.f32 %v143, %v721
  %v723 = vpop.f32.mrf.mxu0
  %v724 = vpop.f32.mrf.mxu0
  %v725 = vadd.f32 %v143, %v724
  %v726 = vpop.f32.mrf.mxu0
  %727 = vmatprep.mubr.bf16.mxu0 0
  %728 = vmatmul.mubr.bf16.gmra.mxu0 %v367
  %v729 = vpop.f32.mrf.mxu0
  %v730 = vadd.f32 %v143, %v729
  %v731 = vpop.f32.mrf.mxu0
  %v732 = vpop.f32.mrf.mxu0
  %v733 = vadd.f32 %v143, %v732
  %v734 = vpop.f32.mrf.mxu0
  %735 = vmatprep.mubr.bf16.mxu0 0
  %736 = vmatmul.mubr.bf16.gmra.mxu0 %v368
  %v737 = vpop.f32.mrf.mxu0
  %v738 = vadd.f32 %v143, %v737
  %v739 = vpop.f32.mrf.mxu0
  %v740 = vpop.f32.mrf.mxu0
  %v741 = vadd.f32 %v143, %v740
  %v742 = vpop.f32.mrf.mxu0
  %743 = vmatprep.mubr.bf16.mxu0 0
  %744 = vmatmul.mubr.bf16.gmra.mxu0 %v369
  %v745 = vpop.f32.mrf.mxu0
  %v746 = vadd.f32 %v143, %v745
  %v747 = vpop.f32.mrf.mxu0
  %v748 = vpop.f32.mrf.mxu0
  %v749 = vadd.f32 %v143, %v748
  %v750 = vpop.f32.mrf.mxu0
  %751 = vmatprep.mubr.bf16.mxu0 0
  %752 = vmatmul.mubr.bf16.gmra.mxu0 %v370
  %v753 = vpop.f32.mrf.mxu0
  %v754 = vadd.f32 %v143, %v753
  %v755 = vpop.f32.mrf.mxu0
  %v756 = vpop.f32.mrf.mxu0
  %v757 = vadd.f32 %v143, %v756
  %v758 = vpop.f32.mrf.mxu0
  %759 = vmatprep.mubr.bf16.mxu0 0
  %760 = vmatmul.mubr.bf16.gmra.mxu0 %v371
  %v761 = vpop.f32.mrf.mxu0
  %v762 = vadd.f32 %v143, %v761
  %v763 = vpop.f32.mrf.mxu0
  %v764 = vpop.f32.mrf.mxu0
  %v765 = vadd.f32 %v143, %v764
  %v766 = vpop.f32.mrf.mxu0
  %767 = vmatprep.mubr.bf16.mxu0 0
  %768 = vmatmul.mubr.bf16.gmra.mxu0 %v372
  %v769 = vpop.f32.mrf.mxu0
  %v770 = vadd.f32 %v143, %v769
  %v771 = vpop.f32.mrf.mxu0
  %v772 = vpop.f32.mrf.mxu0
  %v773 = vadd.f32 %v143, %v772
  %v774 = vpop.f32.mrf.mxu0
  %775 = vmatprep.mubr.bf16.mxu0 0
  %776 = vmatmul.mubr.bf16.gmra.mxu0 %v373
  %v777 = vpop.f32.mrf.mxu0
  %v778 = vadd.f32 %v143, %v777
  %v779 = vpop.f32.mrf.mxu0
  %v780 = vpop.f32.mrf.mxu0
  %v781 = vadd.f32 %v143, %v780
  %v782 = vpop.f32.mrf.mxu0
  %783 = vmatprep.mubr.bf16.mxu0 0
  %784 = vmatmul.mubr.bf16.gmra.mxu0 %v374
  %v785 = vpop.f32.mrf.mxu0
  %v786 = vadd.f32 %v143, %v785
  %v787 = vpop.f32.mrf.mxu0
  %v788 = vpop.f32.mrf.mxu0
  %v789 = vadd.f32 %v143, %v788
  %v790 = vpop.f32.mrf.mxu0
  %791 = vmatprep.mubr.bf16.mxu0 0
  %792 = vmatmul.mubr.bf16.gmra.mxu0 %v375
  %v793 = vpop.f32.mrf.mxu0
  %v794 = vadd.f32 %v143, %v793
  %v795 = vpop.f32.mrf.mxu0
  %v796 = vpop.f32.mrf.mxu0
  %v797 = vadd.f32 %v143, %v796
  %v798 = vpop.f32.mrf.mxu0
  %799 = vmatprep.mubr.bf16.mxu0 0
  %800 = vmatmul.mubr.bf16.gmra.mxu0 %v376
  %v801 = vpop.f32.mrf.mxu0
  %v802 = vadd.f32 %v143, %v801
  %v803 = vpop.f32.mrf.mxu0
  %v804 = vpop.f32.mrf.mxu0
  %v805 = vadd.f32 %v143, %v804
  %v806 = vpop.f32.mrf.mxu0
  %807 = vmatprep.mubr.bf16.mxu0 0
  %808 = vmatmul.mubr.bf16.gmra.mxu0 %v377
  %v809 = vpop.f32.mrf.mxu0
  %v810 = vadd.f32 %v143, %v809
  %v811 = vpop.f32.mrf.mxu0
  %v812 = vpop.f32.mrf.mxu0
  %v813 = vadd.f32 %v143, %v812
  %v814 = vpop.f32.mrf.mxu0
  %815 = vmatprep.mubr.bf16.mxu0 0
  %816 = vmatmul.mubr.bf16.gmra.mxu0 %v378
  %v817 = vpop.f32.mrf.mxu0
  %v818 = vadd.f32 %v143, %v817
  %v819 = vpop.f32.mrf.mxu0
  %v820 = vpop.f32.mrf.mxu0
  %v821 = vadd.f32 %v143, %v820
  %v822 = vpop.f32.mrf.mxu0
  %823 = vmatprep.mubr.bf16.mxu0 0
  %824 = vmatmul.mubr.bf16.gmra.mxu0 %v379
  %v825 = vpop.f32.mrf.mxu0
  %v826 = vadd.f32 %v143, %v825
  %v827 = vpop.f32.mrf.mxu0
  %v828 = vpop.f32.mrf.mxu0
  %v829 = vadd.f32 %v143, %v828
  %v830 = vpop.f32.mrf.mxu0
  %831 = vmatprep.mubr.bf16.mxu0 0
  %832 = vmatmul.mubr.bf16.gmra.mxu0 %v380
  %v833 = vpop.f32.mrf.mxu0
  %v834 = vadd.f32 %v143, %v833
  %v835 = vpop.f32.mrf.mxu0
  %v836 = vpop.f32.mrf.mxu0
  %v837 = vadd.f32 %v143, %v836
  %v838 = vpop.f32.mrf.mxu0
  %839 = vmatprep.mubr.bf16.mxu0 0
  %840 = vmatmul.mubr.bf16.gmra.mxu0 %v381
  %v841 = vpop.f32.mrf.mxu0
  %v842 = vadd.f32 %v143, %v841
  %v843 = vpop.f32.mrf.mxu0
  %v844 = vpop.f32.mrf.mxu0
  %v845 = vadd.f32 %v143, %v844
  %v846 = vpop.f32.mrf.mxu0
  %847 = vmatprep.mubr.bf16.mxu0 0
  %848 = vmatmul.mubr.bf16.gmra.mxu0 %v382
  %v849 = vpop.f32.mrf.mxu0
  %v850 = vadd.f32 %v143, %v849
  %v851 = vpop.f32.mrf.mxu0
  %v852 = vpop.f32.mrf.mxu0
  %v853 = vadd.f32 %v143, %v852
  %v854 = vpop.f32.mrf.mxu0
  %855 = vmatprep.mubr.bf16.mxu0 0
  %856 = vmatmul.mubr.bf16.gmra.mxu0 %v383
  %v857 = vpop.f32.mrf.mxu0
  %v858 = vadd.f32 %v143, %v857
  %v859 = vpop.f32.mrf.mxu0
  %v860 = vpop.f32.mrf.mxu0
  %v861 = vadd.f32 %v143, %v860
  %v862 = vpop.f32.mrf.mxu0
  %863 = vmatprep.mubr.bf16.mxu0 0
  %864 = vmatmul.mubr.bf16.gmra.mxu0 %v384
  %v865 = vpop.f32.mrf.mxu0
  %v866 = vadd.f32 %v143, %v865
  %v867 = vpop.f32.mrf.mxu0
  %v868 = vpop.f32.mrf.mxu0
  %v869 = vadd.f32 %v143, %v868
  %v870 = vpop.f32.mrf.mxu0
  %871 = vmatprep.mubr.bf16.mxu0 0
  %872 = vmatmul.mubr.bf16.gmra.mxu0 %v385
  %v873 = vpop.f32.mrf.mxu0
  %v874 = vadd.f32 %v143, %v873
  %v875 = vpop.f32.mrf.mxu0
  %v876 = vpop.f32.mrf.mxu0
  %v877 = vadd.f32 %v143, %v876
  %v878 = vpop.f32.mrf.mxu0
  %879 = vmatprep.mubr.bf16.mxu0 0
  %880 = vmatmul.mubr.bf16.gmra.mxu0 %v386
  %v881 = vpop.f32.mrf.mxu0
  %v882 = vadd.f32 %v143, %v881
  %v883 = vpop.f32.mrf.mxu0
  %v884 = vpop.f32.mrf.mxu0
  %v885 = vadd.f32 %v143, %v884
  %v886 = vpop.f32.mrf.mxu0
  %887 = vmatprep.mubr.bf16.mxu0 0
  %888 = vmatmul.mubr.bf16.gmra.mxu0 %v387
  %v889 = vpop.f32.mrf.mxu0
  %v890 = vadd.f32 %v143, %v889
  %v891 = vpop.f32.mrf.mxu0
  %v892 = vpop.f32.mrf.mxu0
  %v893 = vadd.f32 %v143, %v892
  %v894 = vpop.f32.mrf.mxu0
  %895 = vmatprep.mubr.bf16.mxu0 0
  %896 = vmatmul.mubr.bf16.gmra.mxu0 %v388
  %v897 = vpop.f32.mrf.mxu0
  %v898 = vadd.f32 %v143, %v897
  %v899 = vpop.f32.mrf.mxu0
  %v900 = vpop.f32.mrf.mxu0
  %v901 = vadd.f32 %v143, %v900
  %v902 = vpop.f32.mrf.mxu0
  %903 = vmatprep.mubr.bf16.mxu0 0
  %904 = vmatmul.mubr.bf16.gmra.mxu0 %v389
  %v905 = vpop.f32.mrf.mxu0
  %v906 = vadd.f32 %v143, %v905
  %v907 = vpop.f32.mrf.mxu0
  %v908 = vpop.f32.mrf.mxu0
  %v909 = vadd.f32 %v143, %v908
  %v910 = vpop.f32.mrf.mxu0
  %911 = vdwg.mxu0
  %v912 = vmax.f32 %v522, 0.0
  %v913 = vmax.f32 %v525, 0.0
  %v914 = vmax.f32 %v530, 0.0
  %v915 = vmax.f32 %v533, 0.0
  %v916 = vmax.f32 %v538, 0.0
  %v917 = vmax.f32 %v541, 0.0
  %v918 = vmax.f32 %v546, 0.0
  %v919 = vmax.f32 %v549, 0.0
  %v920 = vmax.f32 %v554, 0.0
  %v921 = vmax.f32 %v557, 0.0
  %v922 = vmax.f32 %v562, 0.0
  %v923 = vmax.f32 %v565, 0.0
  %v924 = vmax.f32 %v570, 0.0
  %v925 = vmax.f32 %v573, 0.0
  %v926 = vmax.f32 %v578, 0.0
  %v927 = vmax.f32 %v581, 0.0
  %v928 = vmax.f32 %v586, 0.0
  %v929 = vmax.f32 %v589, 0.0
  %v930 = vmax.f32 %v594, 0.0
  %v931 = vmax.f32 %v597, 0.0
  %v932 = vmax.f32 %v602, 0.0
  %v933 = vmax.f32 %v605, 0.0
  %v934 = vmax.f32 %v610, 0.0
  %v935 = vmax.f32 %v613, 0.0
  %v936 = vmax.f32 %v618, 0.0
  %v937 = vmax.f32 %v621, 0.0
  %v938 = vmax.f32 %v626, 0.0
  %v939 = vmax.f32 %v629, 0.0
  %v940 = vmax.f32 %v634, 0.0
  %v941 = vmax.f32 %v637, 0.0
  %v942 = vmax.f32 %v642, 0.0
  %v943 = vmax.f32 %v645, 0.0
  %v944 = vmax.f32 %v650, 0.0
  %v945 = vmax.f32 %v653, 0.0
  %v946 = vmax.f32 %v658, 0.0
  %v947 = vmax.f32 %v661, 0.0
  %v948 = vmax.f32 %v666, 0.0
  %v949 = vmax.f32 %v669, 0.0
  %v950 = vmax.f32 %v674, 0.0
  %v951 = vmax.f32 %v677, 0.0
  %v952 = vmax.f32 %v682, 0.0
  %v953 = vmax.f32 %v685, 0.0
  %v954 = vmax.f32 %v690, 0.0
  %v955 = vmax.f32 %v693, 0.0
  %v956 = vmax.f32 %v698, 0.0
  %v957 = vmax.f32 %v701, 0.0
  %v958 = vmax.f32 %v706, 0.0
  %v959 = vmax.f32 %v709, 0.0
  %v960 = vmax.f32 %v714, 0.0
  %v961 = vmax.f32 %v717, 0.0
  %v962 = vmax.f32 %v722, 0.0
  %v963 = vmax.f32 %v725, 0.0
  %v964 = vmax.f32 %v730, 0.0
  %v965 = vmax.f32 %v733, 0.0
  %v966 = vmax.f32 %v738, 0.0
  %v967 = vmax.f32 %v741, 0.0
  %v968 = vmax.f32 %v746, 0.0
  %v969 = vmax.f32 %v749, 0.0
  %v970 = vmax.f32 %v754, 0.0
  %v971 = vmax.f32 %v757, 0.0
  %v972 = vmax.f32 %v762, 0.0
  %v973 = vmax.f32 %v765, 0.0
  %v974 = vmax.f32 %v770, 0.0
  %v975 = vmax.f32 %v773, 0.0
  %v976 = vmax.f32 %v778, 0.0
  %v977 = vmax.f32 %v781, 0.0
  %v978 = vmax.f32 %v786, 0.0
  %v979 = vmax.f32 %v789, 0.0
  %v980 = vmax.f32 %v794, 0.0
  %v981 = vmax.f32 %v797, 0.0
  %v982 = vmax.f32 %v802, 0.0
  %v983 = vmax.f32 %v805, 0.0
  %v984 = vmax.f32 %v810, 0.0
  %v985 = vmax.f32 %v813, 0.0
  %v986 = vmax.f32 %v818, 0.0
  %v987 = vmax.f32 %v821, 0.0
  %v988 = vmax.f32 %v826, 0.0
  %v989 = vmax.f32 %v829, 0.0
  %v990 = vmax.f32 %v834, 0.0
  %v991 = vmax.f32 %v837, 0.0
  %v992 = vmax.f32 %v842, 0.0
  %v993 = vmax.f32 %v845, 0.0
  %v994 = vmax.f32 %v850, 0.0
  %v995 = vmax.f32 %v853, 0.0
  %v996 = vmax.f32 %v858, 0.0
  %v997 = vmax.f32 %v861, 0.0
  %v998 = vmax.f32 %v866, 0.0
  %v999 = vmax.f32 %v869, 0.0
  %v1000 = vmax.f32 %v874, 0.0
  %v1001 = vmax.f32 %v877, 0.0
  %v1002 = vmax.f32 %v882, 0.0
  %v1003 = vmax.f32 %v885, 0.0
  %v1004 = vmax.f32 %v890, 0.0
  %v1005 = vmax.f32 %v893, 0.0
  %v1006 = vmax.f32 %v898, 0.0
  %v1007 = vmax.f32 %v901, 0.0
  %v1008 = vmax.f32 %v906, 0.0
  %v1009 = vmax.f32 %v909, 0.0
  %v1010 = vpack.c.bf16 %v913, %v912
  %v1011 = vpack.c.bf16 %v915, %v914
  %v1012 = vpack.c.bf16 %v917, %v916
  %v1013 = vpack.c.bf16 %v919, %v918
  %v1014 = vpack.c.bf16 %v921, %v920
  %v1015 = vpack.c.bf16 %v923, %v922
  %v1016 = vpack.c.bf16 %v925, %v924
  %v1017 = vpack.c.bf16 %v927, %v926
  %v1018 = vpack.c.bf16 %v929, %v928
  %v1019 = vpack.c.bf16 %v931, %v930
  %v1020 = vpack.c.bf16 %v933, %v932
  %v1021 = vpack.c.bf16 %v935, %v934
  %v1022 = vpack.c.bf16 %v937, %v936
  %v1023 = vpack.c.bf16 %v939, %v938
  %v1024 = vpack.c.bf16 %v941, %v940
  %v1025 = vpack.c.bf16 %v943, %v942
  %v1026 = vpack.c.bf16 %v945, %v944
  %v1027 = vpack.c.bf16 %v947, %v946
  %v1028 = vpack.c.bf16 %v949, %v948
  %v1029 = vpack.c.bf16 %v951, %v950
  %v1030 = vpack.c.bf16 %v953, %v952
  %v1031 = vpack.c.bf16 %v955, %v954
  %v1032 = vpack.c.bf16 %v957, %v956
  %v1033 = vpack.c.bf16 %v959, %v958
  %v1034 = vpack.c.bf16 %v961, %v960
  %v1035 = vpack.c.bf16 %v963, %v962
  %v1036 = vpack.c.bf16 %v965, %v964
  %v1037 = vpack.c.bf16 %v967, %v966
  %v1038 = vpack.c.bf16 %v969, %v968
  %v1039 = vpack.c.bf16 %v971, %v970
  %v1040 = vpack.c.bf16 %v973, %v972
  %v1041 = vpack.c.bf16 %v975, %v974
  %v1042 = vpack.c.bf16 %v977, %v976
  %v1043 = vpack.c.bf16 %v979, %v978
  %v1044 = vpack.c.bf16 %v981, %v980
  %v1045 = vpack.c.bf16 %v983, %v982
  %v1046 = vpack.c.bf16 %v985, %v984
  %v1047 = vpack.c.bf16 %v987, %v986
  %v1048 = vpack.c.bf16 %v989, %v988
  %v1049 = vpack.c.bf16 %v991, %v990
  %v1050 = vpack.c.bf16 %v993, %v992
  %v1051 = vpack.c.bf16 %v995, %v994
  %v1052 = vpack.c.bf16 %v997, %v996
  %v1053 = vpack.c.bf16 %v999, %v998
  %v1054 = vpack.c.bf16 %v1001, %v1000
  %v1055 = vpack.c.bf16 %v1003, %v1002
  %v1056 = vpack.c.bf16 %v1005, %v1004
  %v1057 = vpack.c.bf16 %v1007, %v1006
  %v1058 = vpack.c.bf16 %v1009, %v1008
  %v1059 = vld [vmem:[%s3] sm:$0xff]
  %v1060 = vld [vmem:[%s3 + $0x8] sm:$0x3f]
  %v1063 = vcombine.high %v1059, %v1059
  %v1065 = vunpack.c.l.s4 1983009808
  %v1066 = vunpack.c.0.s8 %v1065
  %v1067 = vlaneseq
  %v1068 = vshrl.u32 %v1067, 7
  %v1069 = vsub.s32 %v1066, %v1068
  %v1070 = vrot.slane %v1059, %v1069
  %v1072 = vunpack.c.l.s4 1983009808
  %v1073 = vunpack.c.0.s8 %v1072
  %v1074 = vlaneseq
  %v1075 = vshrl.u32 %v1074, 7
  %v1076 = vsub.s32 %v1073, %v1075
  %v1077 = vrot.slane %v1063, %v1076
  %v1078 = vcombine.high %v1070, %v1070
  %v1079 = vcombine.high %v1077, %v1077
  %v1080 = vcombine.high %v1060, %v1060
  %v1082 = vunpack.c.l.s4 1983009808
  %v1083 = vunpack.c.0.s8 %v1082
  %v1084 = vlaneseq
  %v1085 = vshrl.u32 %v1084, 7
  %v1086 = vsub.s32 %v1083, %v1085
  %v1087 = vrot.slane %v1060, %v1086
  %v1089 = vunpack.c.l.s4 1983009808
  %v1090 = vunpack.c.0.s8 %v1089
  %v1091 = vlaneseq
  %v1092 = vshrl.u32 %v1091, 7
  %v1093 = vsub.s32 %v1090, %v1092
  %v1094 = vrot.slane %v1080, %v1093
  %v1095 = vcombine.high %v1087, %v1087
  %vm1102 = vcmask 130048
  %v1104 = vsel %vm1102, %v1094, 0
  %1106 = vmatprep.subr.bf16.mxu0 0
  %1107 = vmatpush1.bf16.msra.mxu0 %v1017
  %1108 = vmatprep.subr.bf16.mxu0 0
  %1109 = vmatpush1.bf16.msra.mxu0 %v1016
  %1110 = vmatprep.subr.bf16.mxu0 0
  %1111 = vmatpush1.bf16.msra.mxu0 %v1015
  %1112 = vmatprep.subr.bf16.mxu0 0
  %1113 = vmatpush1.bf16.msra.mxu0 %v1014
  %1114 = vmatprep.subr.bf16.mxu0 0
  %1115 = vmatpush1.bf16.msra.mxu0 %v1013
  %1116 = vmatprep.subr.bf16.mxu0 0
  %1117 = vmatpush1.bf16.msra.mxu0 %v1012
  %1118 = vmatprep.subr.bf16.mxu0 0
  %1119 = vmatpush1.bf16.msra.mxu0 %v1011
  %1120 = vmatprep.subr.bf16.mxu0 0
  %1121 = vmatpush1.bf16.msra.mxu0 %v1010
  %1122 = vmatprep.subr.bf16.mxu0 0
  %1123 = vmatpush2.bf16.msra.mxu0 %v1025
  %1124 = vmatprep.subr.bf16.mxu0 0
  %1125 = vmatpush2.bf16.msra.mxu0 %v1024
  %1126 = vmatprep.subr.bf16.mxu0 0
  %1127 = vmatpush2.bf16.msra.mxu0 %v1023
  %1128 = vmatprep.subr.bf16.mxu0 0
  %1129 = vmatpush2.bf16.msra.mxu0 %v1022
  %1130 = vmatprep.subr.bf16.mxu0 0
  %1131 = vmatpush2.bf16.msra.mxu0 %v1021
  %1132 = vmatprep.subr.bf16.mxu0 0
  %1133 = vmatpush2.bf16.msra.mxu0 %v1020
  %1134 = vmatprep.subr.bf16.mxu0 0
  %1135 = vmatpush2.bf16.msra.mxu0 %v1019
  %1136 = vmatprep.subr.bf16.mxu0 0
  %1137 = vmatpush2.bf16.msra.mxu0 %v1018
  %1138 = vmatprep.mubr.bf16.mxu0 %v1078
  %1139 = vmatmul.mubr.bf16.gmra.mxu0 %v1070
  %v1140 = vpop.f32.mrf.mxu0
  %v1141 = vadd.f32 0.0, %v1140
  %v1142 = vpop.f32.mrf.mxu0
  %v1143 = vpop.f32.mrf.mxu0
  %v1144 = vpop.f32.mrf.mxu0
  %1145 = vdwg.mxu0
  %1146 = vmatprep.subr.bf16.mxu0 0
  %1147 = vmatpush1.bf16.msra.mxu0 %v1033
  %1148 = vmatprep.subr.bf16.mxu0 0
  %1149 = vmatpush1.bf16.msra.mxu0 %v1032
  %1150 = vmatprep.subr.bf16.mxu0 0
  %1151 = vmatpush1.bf16.msra.mxu0 %v1031
  %1152 = vmatprep.subr.bf16.mxu0 0
  %1153 = vmatpush1.bf16.msra.mxu0 %v1030
  %1154 = vmatprep.subr.bf16.mxu0 0
  %1155 = vmatpush1.bf16.msra.mxu0 %v1029
  %1156 = vmatprep.subr.bf16.mxu0 0
  %1157 = vmatpush1.bf16.msra.mxu0 %v1028
  %1158 = vmatprep.subr.bf16.mxu0 0
  %1159 = vmatpush1.bf16.msra.mxu0 %v1027
  %1160 = vmatprep.subr.bf16.mxu0 0
  %1161 = vmatpush1.bf16.msra.mxu0 %v1026
  %1162 = vmatprep.subr.bf16.mxu0 0
  %1163 = vmatpush2.bf16.msra.mxu0 %v1041
  %1164 = vmatprep.subr.bf16.mxu0 0
  %1165 = vmatpush2.bf16.msra.mxu0 %v1040
  %1166 = vmatprep.subr.bf16.mxu0 0
  %1167 = vmatpush2.bf16.msra.mxu0 %v1039
  %1168 = vmatprep.subr.bf16.mxu0 0
  %1169 = vmatpush2.bf16.msra.mxu0 %v1038
  %1170 = vmatprep.subr.bf16.mxu0 0
  %1171 = vmatpush2.bf16.msra.mxu0 %v1037
  %1172 = vmatprep.subr.bf16.mxu0 0
  %1173 = vmatpush2.bf16.msra.mxu0 %v1036
  %1174 = vmatprep.subr.bf16.mxu0 0
  %1175 = vmatpush2.bf16.msra.mxu0 %v1035
  %1176 = vmatprep.subr.bf16.mxu0 0
  %1177 = vmatpush2.bf16.msra.mxu0 %v1034
  %1178 = vmatprep.mubr.bf16.mxu0 %v1079
  %1179 = vmatmul.mubr.bf16.gmra.mxu0 %v1077
  %v1180 = vpop.f32.mrf.mxu0
  %v1181 = vadd.f32 %v1141, %v1180
  %v1182 = vpop.f32.mrf.mxu0
  %v1183 = vpop.f32.mrf.mxu0
  %v1184 = vpop.f32.mrf.mxu0
  %1185 = vdwg.mxu0
  %1186 = vmatprep.subr.bf16.mxu0 0
  %1187 = vmatpush1.bf16.msra.mxu0 %v1049
  %1188 = vmatprep.subr.bf16.mxu0 0
  %1189 = vmatpush1.bf16.msra.mxu0 %v1048
  %1190 = vmatprep.subr.bf16.mxu0 0
  %1191 = vmatpush1.bf16.msra.mxu0 %v1047
  %1192 = vmatprep.subr.bf16.mxu0 0
  %1193 = vmatpush1.bf16.msra.mxu0 %v1046
  %1194 = vmatprep.subr.bf16.mxu0 0
  %1195 = vmatpush1.bf16.msra.mxu0 %v1045
  %1196 = vmatprep.subr.bf16.mxu0 0
  %1197 = vmatpush1.bf16.msra.mxu0 %v1044
  %1198 = vmatprep.subr.bf16.mxu0 0
  %1199 = vmatpush1.bf16.msra.mxu0 %v1043
  %1200 = vmatprep.subr.bf16.mxu0 0
  %1201 = vmatpush1.bf16.msra.mxu0 %v1042
  %1202 = vmatprep.subr.bf16.mxu0 0
  %1203 = vmatpush2.bf16.msra.mxu0 %v1057
  %1204 = vmatprep.subr.bf16.mxu0 0
  %1205 = vmatpush2.bf16.msra.mxu0 %v1056
  %1206 = vmatprep.subr.bf16.mxu0 0
  %1207 = vmatpush2.bf16.msra.mxu0 %v1055
  %1208 = vmatprep.subr.bf16.mxu0 0
  %1209 = vmatpush2.bf16.msra.mxu0 %v1054
  %1210 = vmatprep.subr.bf16.mxu0 0
  %1211 = vmatpush2.bf16.msra.mxu0 %v1053
  %1212 = vmatprep.subr.bf16.mxu0 0
  %1213 = vmatpush2.bf16.msra.mxu0 %v1052
  %1214 = vmatprep.subr.bf16.mxu0 0
  %1215 = vmatpush2.bf16.msra.mxu0 %v1051
  %1216 = vmatprep.subr.bf16.mxu0 0
  %1217 = vmatpush2.bf16.msra.mxu0 %v1050
  %1218 = vmatprep.mubr.bf16.mxu0 %v1095
  %1219 = vmatmul.mubr.bf16.gmra.mxu0 %v1087
  %v1220 = vpop.f32.mrf.mxu0
  %v1221 = vadd.f32 %v1181, %v1220
  %v1222 = vpop.f32.mrf.mxu0
  %v1223 = vpop.f32.mrf.mxu0
  %v1224 = vpop.f32.mrf.mxu0
  %1225 = vdwg.mxu0
  %1226 = vmatprep.subr.bf16.mxu0 0
  %1227 = vmatpush1.bf16.msra.mxu0 0
  %1228 = vmatprep.subr.bf16.mxu0 0
  %1229 = vmatpush1.bf16.msra.mxu0 0
  %1230 = vmatprep.subr.bf16.mxu0 0
  %1231 = vmatpush1.bf16.msra.mxu0 0
  %1232 = vmatprep.subr.bf16.mxu0 0
  %1233 = vmatpush1.bf16.msra.mxu0 0
  %1234 = vmatprep.subr.bf16.mxu0 0
  %1235 = vmatpush1.bf16.msra.mxu0 0
  %1236 = vmatprep.subr.bf16.mxu0 0
  %1237 = vmatpush1.bf16.msra.mxu0 0
  %1238 = vmatprep.subr.bf16.mxu0 0
  %1239 = vmatpush1.bf16.msra.mxu0 0
  %1240 = vmatprep.subr.bf16.mxu0 0
  %1241 = vmatpush1.bf16.msra.mxu0 %v1058
  %1242 = vmatprep.subr.bf16.mxu0 0
  %1243 = vmatpush2.bf16.msra.mxu0 0
  %1244 = vmatprep.subr.bf16.mxu0 0
  %1245 = vmatpush2.bf16.msra.mxu0 0
  %1246 = vmatprep.subr.bf16.mxu0 0
  %1247 = vmatpush2.bf16.msra.mxu0 0
  %1248 = vmatprep.subr.bf16.mxu0 0
  %1249 = vmatpush2.bf16.msra.mxu0 0
  %1250 = vmatprep.subr.bf16.mxu0 0
  %1251 = vmatpush2.bf16.msra.mxu0 0
  %1252 = vmatprep.subr.bf16.mxu0 0
  %1253 = vmatpush2.bf16.msra.mxu0 0
  %1254 = vmatprep.subr.bf16.mxu0 0
  %1255 = vmatpush2.bf16.msra.mxu0 0
  %1256 = vmatprep.subr.bf16.mxu0 0
  %1257 = vmatpush2.bf16.msra.mxu0 0
  %1258 = vmatprep.mubr.bf16.mxu0 0
  %1259 = vmatmul.mubr.bf16.gmra.mxu0 %v1104
  %v1260 = vpop.f32.mrf.mxu0
  %v1261 = vadd.f32 %v1221, %v1260
  %v1262 = vpop.f32.mrf.mxu0
  %v1263 = vpop.f32.mrf.mxu0
  %v1264 = vpop.f32.mrf.mxu0
  %1265 = vdwg.mxu0
  %v1266 = vmul.f32 %v1261, 0.0051020407
  %v1267 = vpack.c.bf16 %v1266, %v1266
  %v1268 = vld [vmem:[%s4] sm:$0xf]
  %v1269 = vld [vmem:[%s4 + $0x4] sm:$0xf]
  %v1270 = vld [vmem:[%s4 + $0x8] sm:$0xf]
  %v1271 = vld [vmem:[%s4 + $0xc] sm:$0xf]
  %v1272 = vld [vmem:[%s4 + $0x10] sm:$0xf]
  %v1273 = vld [vmem:[%s4 + $0x14] sm:$0xf]
  %v1274 = vld [vmem:[%s4 + $0x18] sm:$0xf]
  %v1275 = vld [vmem:[%s4 + $0x1c] sm:$0xf]
  %v1276 = vld [vmem:[%s4 + $0x20] sm:$0xf]
  %v1277 = vld [vmem:[%s4 + $0x24] sm:$0xf]
  %v1278 = vld [vmem:[%s4 + $0x28] sm:$0xf]
  %v1279 = vld [vmem:[%s4 + $0x2c] sm:$0xf]
  %v1280 = vld [vmem:[%s4 + $0x30] sm:$0xf]
  %v1281 = vld [vmem:[%s4 + $0x34] sm:$0xf]
  %v1282 = vld [vmem:[%s4 + $0x38] sm:$0xf]
  %v1283 = vld [vmem:[%s4 + $0x3c] sm:$0xf]
  %v1284 = vld [vmem:[%s5] sm:$0x1]
  %v1286 = vlaneseq
  %v1287 = vshrl.u32 %v1286, 7
  %v1288 = vsub.s32 0, %v1287
  %v1289 = vrot.slane %v1284, %v1288
  %v1307 = vunpack.c.l.b16 %v1268
  %v1308 = vunpack.c.l.b16 %v1269
  %v1309 = vunpack.c.l.b16 %v1270
  %v1310 = vunpack.c.l.b16 %v1271
  %v1311 = vunpack.c.l.b16 %v1272
  %v1312 = vunpack.c.l.b16 %v1273
  %v1313 = vunpack.c.l.b16 %v1274
  %v1314 = vunpack.c.l.b16 %v1275
  %v1315 = vunpack.c.l.b16 %v1276
  %v1316 = vunpack.c.l.b16 %v1277
  %v1317 = vunpack.c.l.b16 %v1278
  %v1318 = vunpack.c.l.b16 %v1279
  %v1319 = vunpack.c.l.b16 %v1280
  %v1320 = vunpack.c.l.b16 %v1281
  %v1321 = vunpack.c.l.b16 %v1282
  %v1322 = vunpack.c.l.b16 %v1283
  %v1323 = vpack.c.b16 %v1308, %v1307
  %v1324 = vpack.c.b16 %v1310, %v1309
  %v1325 = vpack.c.b16 %v1312, %v1311
  %v1326 = vpack.c.b16 %v1314, %v1313
  %v1327 = vpack.c.b16 %v1316, %v1315
  %v1328 = vpack.c.b16 %v1318, %v1317
  %v1329 = vpack.c.b16 %v1320, %v1319
  %v1330 = vpack.c.b16 %v1322, %v1321
  %1339 = vmatprep.subr.bf16.mxu0 0
  %1340 = vmatpush1.bf16.msra.mxu0 %v1330
  %1341 = vmatprep.subr.bf16.mxu0 0
  %1342 = vmatpush1.bf16.msra.mxu0 %v1329
  %1343 = vmatprep.subr.bf16.mxu0 0
  %1344 = vmatpush1.bf16.msra.mxu0 %v1328
  %1345 = vmatprep.subr.bf16.mxu0 0
  %1346 = vmatpush1.bf16.msra.mxu0 %v1327
  %1347 = vmatprep.subr.bf16.mxu0 0
  %1348 = vmatpush1.bf16.msra.mxu0 %v1326
  %1349 = vmatprep.subr.bf16.mxu0 0
  %1350 = vmatpush1.bf16.msra.mxu0 %v1325
  %1351 = vmatprep.subr.bf16.mxu0 0
  %1352 = vmatpush1.bf16.msra.mxu0 %v1324
  %1353 = vmatprep.subr.bf16.mxu0 0
  %1354 = vmatpush1.bf16.msra.mxu0 %v1323
  %1355 = vmatprep.subr.bf16.mxu0 0
  %1356 = vmatpush2.bf16.msra.mxu0 0
  %1357 = vmatprep.subr.bf16.mxu0 0
  %1358 = vmatpush2.bf16.msra.mxu0 0
  %1359 = vmatprep.subr.bf16.mxu0 0
  %1360 = vmatpush2.bf16.msra.mxu0 0
  %1361 = vmatprep.subr.bf16.mxu0 0
  %1362 = vmatpush2.bf16.msra.mxu0 0
  %1363 = vmatprep.subr.bf16.mxu0 0
  %1364 = vmatpush2.bf16.msra.mxu0 0
  %1365 = vmatprep.subr.bf16.mxu0 0
  %1366 = vmatpush2.bf16.msra.mxu0 0
  %1367 = vmatprep.subr.bf16.mxu0 0
  %1368 = vmatpush2.bf16.msra.mxu0 0
  %1369 = vmatprep.subr.bf16.mxu0 0
  %1370 = vmatpush2.bf16.msra.mxu0 0
  %1371 = vmatprep.mubr.bf16.mxu0 0
  %1372 = vmatmul.mubr.bf16.gmra.mxu0 %v1267
  %v1373 = vpop.f32.mrf.mxu0
  %v1374 = vadd.f32 %v1289, %v1373
  %v1375 = vpop.f32.mrf.mxu0
  %v1376 = vpop.f32.mrf.mxu0
  %v1377 = vpop.f32.mrf.mxu0
  %1378 = vdwg.mxu0
  %vm1379 = vcmask 257024
  %1380 = vst.msk [vmem:[%s6] sm:$0xf] %vm1379, %v1374
  // Predicated region
  $region26: #{forward.1} parent=0 // pred_check
    _
  $region27: #{forward.1} parent=0 // pred_check_branch
    %1382 = sbr.rel (0) target = $region29
  $region28: #{forward.1} parent=0 // pred_region
    _
  $region29: #{forward.1} parent=0 // pred_fallthru
    _
  // Predicated region
  $region30: #{forward.1} parent=0 // pred_check
    _
  $region31: #{forward.1} parent=0 // pred_check_branch
    %1384 = sbr.rel (0) target = $region33
  $region32: #{forward.1} parent=0 // pred_region
    _
  $region33: #{forward.1} parent=0 // pred_fallthru
    _

</llo_original>
